<compile_context>
chip_gen: v7x
topology: tpu7x:2x2x1
jax: 0.10.0
libtpu: 0.0.40
codegen_flags: <defaults>
</compile_context>

<pallas_src>
import functools

import jax
import jax.numpy as jnp
from jax import lax
from jax.experimental import pallas as pl
from jax.experimental.pallas import tpu as pltpu

_LANE = 128
_SUBLANE = 8
_SLAB_ROWS = 256                  # 256 x 128 f32 slab = 128 KiB of live vregs
_BLOCK_BYTES = 4 * 1024 * 1024    # ~4 MiB per (double-buffered) input block


def _cdiv(a, b):
    return (a + b - 1) // b


def _round_up(a, b):
    return _cdiv(a, b) * b


def _hinge_elem(x, mode):
    if mode == "gen":
        return -x
    if mode == "real":
        return jnp.maximum(1.0 - x, 0.0)
    return jnp.maximum(1.0 + x, 0.0)  # fake


def _hinge_sum_kernel(x_ref, out_ref, *, mode, block_rows, slab_rows,
                      blocks_per_split, num_blocks, total_rows):
    c = pl.program_id(0)               # core split ("parallel"; v7x megacore)
    i = pl.program_id(1)               # reduction axis ("arbitrary")
    b = c * blocks_per_split + i       # logical block id

    @pl.when(i == 0)
    def _():
        out_ref[...] = jnp.zeros_like(out_ref)

    n_slabs = block_rows // slab_rows
    in_range = b < num_blocks
    is_full = (b + 1) * block_rows <= total_rows   # block has no ragged rows

    def accumulate(masked):
        def body(j, acc):
            r0 = pl.multiple_of(j * slab_rows, slab_rows)
            x = x_ref[pl.ds(r0, slab_rows), :].astype(jnp.float32)
            v = _hinge_elem(x, mode)
            if masked:
                # Mask rows past the true extent; jnp.where is a select, so
                # garbage (even NaN) in the padded region cannot leak.
                row_ids = lax.broadcasted_iota(jnp.int32, (slab_rows, _LANE), 0)
                grow = b * block_rows + j * slab_rows + row_ids
                v = jnp.where(grow < total_rows, v, 0.0)
            # (S,128) -> (S/8,8,128) -> sum over leading axis: pure VPU vreg
            # adds (no cross-lane XLU work); carry is exactly one vreg.
            return acc + v.reshape(slab_rows // _SUBLANE, _SUBLANE, _LANE).sum(axis=0)

        acc = lax.fori_loop(0, n_slabs, body,
                            jnp.zeros((_SUBLANE, _LANE), jnp.float32))
        out_ref[...] += acc

    # Hot path: full in-range blocks accumulate with no per-element mask.
    @pl.when(jnp.logical_and(in_range, is_full))
    def _():
        accumulate(masked=False)

    # Only the ragged last block pays for iota + compare + select.  Padded /
    # clamped out-of-range blocks skip compute entirely (their DMA still runs
    # but they contribute exactly zero).
    @pl.when(jnp.logical_and(in_range, jnp.logical_not(is_full)))
    def _():
        accumulate(masked=True)


def hinge_gan_loss(x, target_is_real, phase=None, *,
                   min_pallas_elems=65536, block_bytes=_BLOCK_BYTES):
    """Pallas implementation of HingeGANLoss.forward. Returns an f32 scalar."""
    if phase == "gen":
        mode = "gen"
    elif target_is_real:
        mode = "real"
    else:
        mode = "fake"

    n = x.size
    if n < min_pallas_elems:
        # Launch/pipeline overhead would dominate; use the fused XLA path.
        return _ref_loss(x, target_is_real, phase)

    flat = jnp.reshape(x, (-1,))          # free reshape, native dtype
    rem = n % _LANE
    tail_sum = jnp.float32(0.0)
    if rem:
        # TODO(synk): for lane-unaligned n the prefix slice below is
        # materialized by XLA (one extra HBM read+write of the tensor since a
        # pallas_call operand cannot fuse with the slice); eliminating it
        # requires a manual-DMA path (memory_space=pl.ANY) over the 1-D array.
        tail = flat[n - rem:].astype(jnp.float32)
        tail_sum = jnp.sum(_hinge_elem(tail, mode))
        flat = flat[: n - rem]

    rows = (n - rem) // _LANE
    if rows == 0:
        return tail_sum / jnp.float32(n)

    x2d = flat.reshape(rows, _LANE)       # zero-copy when n % 128 == 0

    itemsize = jnp.dtype(x.dtype).itemsize
    # Block size derived from bytes (HBM-bound kernel): ~4 MiB per buffer.
    target_rows = _round_up(max(16, block_bytes // (_LANE * itemsize)), 16)
    block_rows = target_rows if rows > target_rows else _round_up(rows, 16)
    slab_rows = min(_SLAB_ROWS, block_rows)
    if block_rows % slab_rows:
        # Keep the slab loop exact; extra rows are masked in the last block.
        block_rows = _round_up(block_rows, slab_rows)

    num_blocks = _cdiv(rows, block_rows)
    # Only shard across the two v7x TensorCores when the single redundant
    # clamped-block DMA is a small fraction of one core's traffic.
    num_splits = 2 if num_blocks >= 8 else 1
    blocks_per_split = _cdiv(num_blocks, num_splits)

    kernel = functools.partial(
        _hinge_sum_kernel,
        mode=mode,
        block_rows=block_rows,
        slab_rows=slab_rows,
        blocks_per_split=blocks_per_split,
        num_blocks=num_blocks,
        total_rows=rows,
    )

    def in_map(c, i):
        # Clamp padded / out-of-range block ids (compute for them is skipped).
        return (jnp.minimum(c * blocks_per_split + i, num_blocks - 1), 0)

    partials = pl.pallas_call(
        kernel,
        out_shape=jax.ShapeDtypeStruct((num_splits * _SUBLANE, _LANE),
                                       jnp.float32),
        grid_spec=pltpu.PrefetchScalarGridSpec(
            num_scalar_prefetch=0,
            grid=(num_splits, blocks_per_split),
            in_specs=[pl.BlockSpec((block_rows, _LANE), in_map)],
            out_specs=pl.BlockSpec((_SUBLANE, _LANE), lambda c, i: (c, 0)),
        ),
        compiler_params=pltpu.CompilerParams(
            dimension_semantics=("parallel", "arbitrary")),
        cost_estimate=pl.CostEstimate(
            flops=2 * rows * _LANE,
            transcendentals=0,
            bytes_accessed=rows * _LANE * itemsize
                           + num_splits * _SUBLANE * _LANE * 4),
    )(x2d)

    total = jnp.sum(partials) + tail_sum
    return total / jnp.float32(n)


def _ref_loss(x, target_is_real, phase=None):
    x = x.astype(jnp.float32)
    if phase == "gen":
        return -jnp.mean(x)
    if target_is_real:
        return jnp.mean(jnp.maximum(1.0 - x, 0.0))
    return jnp.mean(jnp.maximum(1.0 + x, 0.0))


if __name__ == "__main__":
    key = jax.random.PRNGKey(0)
    k0, k1, k2, k3 = jax.random.split(key, 4)

    # Discriminator-style output maps (NCHW).
    tests = [
        (jax.random.normal(k0, (2, 4, 16, 16), dtype=jnp.float32), {}),     # aligned
        (jax.random.normal(k1, (2, 3, 15, 17), dtype=jnp.float32), {}),     # unaligned tail
        (jax.random.normal(k2, (2, 8, 96, 96)).astype(jnp.bfloat16), {}),   # bf16
        # Small block_bytes overrides exercise multi-block accumulation, the
        # ragged last block, the 2-way core split and the clamped-block skip.
        (jax.random.normal(k3, (2, 8, 96, 96), dtype=jnp.float32),
         dict(block_bytes=64 * 1024)),
        (jax.random.normal(k3, (2, 8, 96, 96), dtype=jnp.float32),
         dict(block_bytes=128 * 1024)),
    ]
    cases = [
        (True, None),     # real
        (False, None),    # fake
        (True, "gen"),    # generator phase
    ]

    for x, kw in tests:
        for target_is_real, phase in cases:
            # min_pallas_elems=0 forces the Pallas path even at demo sizes.
            out = hinge_gan_loss(x, target_is_real, phase,
                                 min_pallas_elems=0, **kw)
            out = jax.block_until_ready(out)
            ref = _ref_loss(x, target_is_real, phase)
            assert jnp.allclose(out, ref, atol=1e-5, rtol=1e-4), (
                x.shape, x.dtype, target_is_real, phase, kw, out, ref)

    # Small-input fast path (pure jnp) with the default threshold.
    x_small = tests[0][0]
    out = jax.block_until_ready(hinge_gan_loss(x_small, True))
    assert jnp.allclose(out, _ref_loss(x_small, True), atol=1e-5, rtol=1e-4)

    print("KERNEL_OK")
</pallas_src>

<mosaic_0001>
module attributes {stable_mosaic.version = 11 : i64} {
  func.func @_hinge_sum_kernel(%arg0: i32, %arg1: i32, %arg2: memref<16x128xf32, #tpu.memory_space<vmem>>, %arg3: memref<8x128xf32, #tpu.memory_space<vmem>>) attributes {dimension_semantics = [#tpu.dimension_semantics<parallel>, #tpu.dimension_semantics<arbitrary>], iteration_bounds = array<i64: 1, 1>, scalar_prefetch = 0 : i64, scratch_operands = 0 : i64, tpu.core_type = #tpu.core_type<tc>, window_params = [{transform_indices = @transform_0, window_bounds = array<i64: 16, 128>}, {transform_indices = @transform_1, window_bounds = array<i64: 8, 128>}]} {
    %c1_i32 = arith.constant 1 : i32
    %0 = arith.muli %arg0, %c1_i32 : i32
    %1 = arith.addi %0, %arg1 : i32
    %c0_i32 = arith.constant 0 : i32
    %2 = arith.cmpi eq, %arg1, %c0_i32 : i32
    %3 = arith.extui %2 : i1 to i32
    %c0_i32_0 = arith.constant 0 : i32
    %4 = arith.cmpi ne, %3, %c0_i32_0 : i32
    scf.if %4 {
      %cst = arith.constant 0.000000e+00 : f32
      %16 = vector.broadcast %cst : f32 to vector<8x128xf32>
      %c0 = arith.constant 0 : index
      %c0_6 = arith.constant 0 : index
      %17 = vector.load %arg3[%c0, %c0_6] : memref<8x128xf32, #tpu.memory_space<vmem>>, vector<8x128xf32>
      tpu.vector_store %arg3[%c0, %c0_6], %16 {strides = array<i32>} : memref<8x128xf32, #tpu.memory_space<vmem>>, vector<8x128xf32>,
    } else {
    }
    %c1_i32_1 = arith.constant 1 : i32
    %5 = arith.cmpi slt, %1, %c1_i32_1 : i32
    %c1_i32_2 = arith.constant 1 : i32
    %6 = arith.addi %1, %c1_i32_2 : i32
    %c16_i32 = arith.constant 16 : i32
    %7 = arith.muli %6, %c16_i32 : i32
    %c16_i32_3 = arith.constant 16 : i32
    %8 = arith.cmpi sle, %7, %c16_i32_3 : i32
    %9 = arith.andi %5, %8 : i1
    %10 = arith.extui %9 : i1 to i32
    %c0_i32_4 = arith.constant 0 : i32
    %11 = arith.cmpi ne, %10, %c0_i32_4 : i32
    scf.if %11 {
      %cst = arith.constant 0.000000e+00 : f32
      %16 = vector.broadcast %cst : f32 to vector<8x128xf32>
      %c0_i32_6 = arith.constant 0 : i32
      %c16_i32_7 = arith.constant 16 : i32
      %17 = arith.muli %c0_i32_6, %c16_i32_7 : i32
      %18 = tpu.assume_multiple %17, 16 : i32
      %19 = arith.index_cast %18 : i32 to index
      %c0 = arith.constant 0 : index
      %20 = vector.load %arg2[%19, %c0] : memref<16x128xf32, #tpu.memory_space<vmem>>, vector<16x128xf32>
      %cst_8 = arith.constant 1.000000e+00 : f32
      %21 = vector.broadcast %cst_8 : f32 to vector<16x128xf32>
      %22 = arith.subf %21, %20 : vector<16x128xf32>
      %cst_9 = arith.constant 0.000000e+00 : f32
      %23 = vector.broadcast %cst_9 : f32 to vector<16x128xf32>
      %24 = arith.maximumf %22, %23 : vector<16x128xf32>
      %25 = vector.shape_cast %24 : vector<16x128xf32> to vector<2x8x128xf32>
      %cst_10 = arith.constant dense<0.000000e+00> : vector<8x128xf32>
      %26 = vector.multi_reduction <add>, %25, %cst_10 [0] : vector<2x8x128xf32> to vector<8x128xf32>
      %27 = arith.addf %16, %26 : vector<8x128xf32>
      %c1_i32_11 = arith.constant 1 : i32
      %c0_12 = arith.constant 0 : index
      %c0_13 = arith.constant 0 : index
      %28 = vector.load %arg3[%c0_12, %c0_13] : memref<8x128xf32, #tpu.memory_space<vmem>>, vector<8x128xf32>
      %29 = arith.addf %28, %27 : vector<8x128xf32>
      %c0_14 = arith.constant 0 : index
      %c0_15 = arith.constant 0 : index
      %30 = vector.load %arg3[%c0_14, %c0_15] : memref<8x128xf32, #tpu.memory_space<vmem>>, vector<8x128xf32>
      tpu.vector_store %arg3[%c0_14, %c0_15], %29 {strides = array<i32>} : memref<8x128xf32, #tpu.memory_space<vmem>>, vector<8x128xf32>,
    } else {
    }
    %true = arith.constant true
    %12 = arith.xori %8, %true : i1
    %13 = arith.andi %5, %12 : i1
    %14 = arith.extui %13 : i1 to i32
    %c0_i32_5 = arith.constant 0 : i32
    %15 = arith.cmpi ne, %14, %c0_i32_5 : i32
    scf.if %15 {
      %cst = arith.constant 0.000000e+00 : f32
      %16 = vector.broadcast %cst : f32 to vector<8x128xf32>
      %c0_i32_6 = arith.constant 0 : i32
      %c16_i32_7 = arith.constant 16 : i32
      %17 = arith.muli %c0_i32_6, %c16_i32_7 : i32
      %18 = tpu.assume_multiple %17, 16 : i32
      %19 = arith.index_cast %18 : i32 to index
      %c0 = arith.constant 0 : index
      %20 = vector.load %arg2[%19, %c0] : memref<16x128xf32, #tpu.memory_space<vmem>>, vector<16x128xf32>
      %cst_8 = arith.constant 1.000000e+00 : f32
      %21 = vector.broadcast %cst_8 : f32 to vector<16x128xf32>
      %22 = arith.subf %21, %20 : vector<16x128xf32>
      %cst_9 = arith.constant 0.000000e+00 : f32
      %23 = vector.broadcast %cst_9 : f32 to vector<16x128xf32>
      %24 = arith.maximumf %22, %23 : vector<16x128xf32>
      %25 = tpu.iota {dimensions = array<i32: 0>} : vector<16x128xi32>
      %c16_i32_10 = arith.constant 16 : i32
      %26 = arith.muli %1, %c16_i32_10 : i32
      %c16_i32_11 = arith.constant 16 : i32
      %27 = arith.muli %c0_i32_6, %c16_i32_11 : i32
      %28 = arith.addi %26, %27 : i32
      %29 = vector.broadcast %28 : i32 to vector<16x128xi32>
      %30 = arith.addi %29, %25 : vector<16x128xi32>
      %c16_i32_12 = arith.constant 16 : i32
      %31 = vector.broadcast %c16_i32_12 : i32 to vector<16x128xi32>
      %32 = arith.cmpi slt, %30, %31 : vector<16x128xi32>
      %cst_13 = arith.constant 0.000000e+00 : f32
      %33 = vector.broadcast %cst_13 : f32 to vector<16x128xf32>
      %34 = arith.select %32, %24, %33 : vector<16x128xi1>, vector<16x128xf32>
      %35 = vector.shape_cast %34 : vector<16x128xf32> to vector<2x8x128xf32>
      %cst_14 = arith.constant dense<0.000000e+00> : vector<8x128xf32>
      %36 = vector.multi_reduction <add>, %35, %cst_14 [0] : vector<2x8x128xf32> to vector<8x128xf32>
      %37 = arith.addf %16, %36 : vector<8x128xf32>
      %c1_i32_15 = arith.constant 1 : i32
      %c0_16 = arith.constant 0 : index
      %c0_17 = arith.constant 0 : index
      %38 = vector.load %arg3[%c0_16, %c0_17] : memref<8x128xf32, #tpu.memory_space<vmem>>, vector<8x128xf32>
      %39 = arith.addf %38, %37 : vector<8x128xf32>
      %c0_18 = arith.constant 0 : index
      %c0_19 = arith.constant 0 : index
      %40 = vector.load %arg3[%c0_18, %c0_19] : memref<8x128xf32, #tpu.memory_space<vmem>>, vector<8x128xf32>
      tpu.vector_store %arg3[%c0_18, %c0_19], %39 {strides = array<i32>} : memref<8x128xf32, #tpu.memory_space<vmem>>, vector<8x128xf32>,
    } else {
    }
    return
  }
  func.func @transform_0(%arg0: i32, %arg1: i32) -> (i32, i32) {
    %c1_i32 = arith.constant 1 : i32
    %0 = arith.muli %arg0, %c1_i32 : i32
    %1 = arith.addi %0, %arg1 : i32
    %c0_i32 = arith.constant 0 : i32
    %2 = arith.minsi %1, %c0_i32 : i32
    %c0_i32_0 = arith.constant 0 : i32
    %c0_i32_1 = arith.constant 0 : i32
    return %2, %c0_i32_0 : i32, i32
  }
  func.func @transform_1(%arg0: i32, %arg1: i32) -> (i32, i32) {
    %c0_i32 = arith.constant 0 : i32
    %c0_i32_0 = arith.constant 0 : i32
    return %arg0, %c0_i32 : i32, i32
  }
}

</mosaic_0001>

<llo_original>
// kernel: tpu_custom_call.1
$region0: #{tpu_custom_call.1}
  #allocation0 [shape = 'u32[]', space=smem, size = 0x4, offset = 0x4, fixed_abs, tag = 'smem constant byte address 0x4 - core index']
  #allocation1 [shape = 'u32[144,128]{1,0:T(1,128)}', space=vmem, size = 0x12000, scoped, tag = 'internal scratch']
  %s0 = inlined_call_operand.hbm [shape: f32[16,128], index: 0, kind: input, shape index: {}]
  %s1 = inlined_call_operand.hbm [shape: f32[8,128], index: 1, kind: output, shape index: {}]
  %s2 = sld [smem:[#allocation0]]
  $region30: #{tpu_custom_call.1} parent=0
    _
  %s4 = ssub.s32 1, %s2
  %s5 = scalar_select 0, %s4, %s2
  $region1: #{tpu_custom_call.1} parent=0
    #allocation2 [shape = 'u8[8192]{0}', space=vmem, size = 0x2000, scoped, tag = 'input window, operand 0, single buffered']
    #allocation3 [shape = 's32[1]{0}', space=sflag, size = 0x4, scoped, tag = 'scoped memory for tpu_custom_call.1']
    #allocation4 [shape = 's32[1]{0}', space=sflag, size = 0x4, scoped, tag = 'scoped memory for tpu_custom_call.1']
    #allocation5 [shape = 'u8[4096]{0}', space=vmem, size = 0x1000, scoped, tag = 'output window, operand 0, single buffered']
    %6 = vsyncpa [#allocation3], 0
    %7 = vsyncpa [#allocation4], 0
    // Predicated region
    $region2: #{tpu_custom_call.1} parent=1 // pred_check
      _
    $region3: #{tpu_custom_call.1} parent=1 // pred_check_branch
      %9 = sbr.rel (0) target = $region5
    $region4: #{tpu_custom_call.1} parent=1 // pred_region
      %s10 = sadd.s32 0, 0
      %p11 = scmp.lt.s32.totalorder %s10, 0
      %s12 = scalar_select %p11, %s10, 0
      %s13 = smul.u32 2, %s12
      %s15 = ssub.s32 256, 256
      %16 = vsyncadd [#allocation3], %s15
      %s17 = smul.addr %s13, 128
      %s18 = scalar_lea.hbm %s0, %s17
      %s19 = sshll.u32 [#allocation2], 4
      %s20 = int_to_ptr.vmem [resolvable:$true] %s19
      %25 = dma.hbm_to_vmem [thread:$0]  %s18, 256, %s20, [#allocation3], 128, 128, 8
    $region5: #{tpu_custom_call.1} parent=1 // pred_fallthru
      _
    // Predicated region
    $region6: #{tpu_custom_call.1} parent=1 // pred_check
      _
    $region7: #{tpu_custom_call.1} parent=1 // pred_check_branch
      %27 = sbr.rel (0) target = $region9
    $region8: #{tpu_custom_call.1} parent=1 // pred_region
      %28 = dma.done [#allocation3], 256
    $region9: #{tpu_custom_call.1} parent=1 // pred_fallthru
      _
    %s29 = sadd.s32 0, 0
    %p30 = scmp.lt.s32.totalorder %s29, 0
    %s31 = scalar_select %p30, %s29, 0
    %s32 = smul.u32 2, %s31
    %s33 = sadd.s32 0, 0
    %p34 = scmp.eq.s32.totalorder 0, 0
    // Predicated region
    $region10: #{tpu_custom_call.1} parent=1 // pred_check
      %p35 = pneg %p34
    $region11: #{tpu_custom_call.1} parent=1 // pred_check_branch
      %37 = sbr.rel (%p35) target = $region13
    $region12: #{tpu_custom_call.1} parent=1 // pred_region
      %38 = vst [vmem:[#allocation5] sm:$0xff] 0.0
    $region13: #{tpu_custom_call.1} parent=1 // pred_fallthru
      _
    %p39 = scmp.lt.s32.totalorder %s33, 1
    %s40 = sadd.s32 %s33, 1
    %s41 = smul.u32 %s40, 16
    %p42 = scmp.le.s32.totalorder %s41, 16
    %p43 = pnand %p39, %p42
    %p44 = pneg %p43
    // Predicated region
    $region14: #{tpu_custom_call.1} parent=1 // pred_check
      _
    $region15: #{tpu_custom_call.1} parent=1 // pred_check_branch
      %46 = sbr.rel (%p43) target = $region17
    $region16: #{tpu_custom_call.1} parent=1 // pred_region
      %v47 = vld [vmem:[#allocation2] sm:$0xff]
      %v48 = vld [vmem:[#allocation2 + $0x8] sm:$0xff]
      %v49 = vsub.f32 1.0, %v47
      %v50 = vsub.f32 1.0, %v48
      %v51 = vmax.f32 %v49, 0.0
      %v52 = vmax.f32 %v50, 0.0
      %v53 = vadd.f32 %v51, %v52
      %v54 = vadd.f32 %v53, 0.0
      %v55 = vld [vmem:[#allocation5] sm:$0xff]
      %v56 = vadd.f32 %v55, %v54
      %57 = vst [vmem:[#allocation5] sm:$0xff] %v56
    $region17: #{tpu_custom_call.1} parent=1 // pred_fallthru
      _
    %p58 = scmp.gt.s32.totalorder %s41, 16
    %p59 = pnand %p39, %p58
    %p60 = pneg %p59
    // Predicated region
    $region18: #{tpu_custom_call.1} parent=1 // pred_check
      _
    $region19: #{tpu_custom_call.1} parent=1 // pred_check_branch
      %62 = sbr.rel (%p59) target = $region21
    $region20: #{tpu_custom_call.1} parent=1 // pred_region
      %v63 = vld [vmem:[#allocation2] sm:$0xff]
      %v64 = vld [vmem:[#allocation2 + $0x8] sm:$0xff]
      %v65 = vsub.f32 1.0, %v63
      %v66 = vsub.f32 1.0, %v64
      %v67 = vmax.f32 %v65, 0.0
      %v68 = vmax.f32 %v66, 0.0
      %v69 = vlaneseq
      %v70 = vshrl.u32 %v69, 7
      %v71 = vadd.s32 %v70, 8
      %s72 = smul.u32 %s33, 16
      %v73 = vstv %s72
      %v74 = vadd.s32 %v73, %v70
      %v75 = vadd.s32 %v73, %v71
      %vm76 = vcmp.lt.s32.totalorder %v74, 16
      %vm77 = vcmp.lt.s32.totalorder %v75, 16
      %v78 = vsel %vm76, %v67, 0.0
      %v79 = vsel %vm77, %v68, 0.0
      %v80 = vadd.f32 %v78, %v79
      %v81 = vadd.f32 %v80, 0.0
      %v82 = vld [vmem:[#allocation5] sm:$0xff]
      %v83 = vadd.f32 %v82, %v81
      %84 = vst [vmem:[#allocation5] sm:$0xff] %v83
    $region21: #{tpu_custom_call.1} parent=1 // pred_fallthru
      _
    // Predicated region
    $region22: #{tpu_custom_call.1} parent=1 // pred_check
      _
    $region23: #{tpu_custom_call.1} parent=1 // pred_check_branch
      %86 = sbr.rel (0) target = $region25
    $region24: #{tpu_custom_call.1} parent=1 // pred_region
      %s88 = ssub.s32 128, 128
      %89 = vsyncadd [#allocation4], %s88
      %s91 = sshll.u32 [#allocation5], 4
      %s92 = int_to_ptr.vmem [resolvable:$true] %s91
      %94 = dma.vmem_to_hbm [thread:$0]  %s92, 128, %s1, [#allocation4]
    $region25: #{tpu_custom_call.1} parent=1 // pred_fallthru
      _
    // Predicated region
    $region26: #{tpu_custom_call.1} parent=1 // pred_check
      _
    $region27: #{tpu_custom_call.1} parent=1 // pred_check_branch
      %96 = sbr.rel (0) target = $region29
    $region28: #{tpu_custom_call.1} parent=1 // pred_region
      %97 = dma.done [#allocation4], 128
    $region29: #{tpu_custom_call.1} parent=1 // pred_fallthru
      _
    %98 = vsyncpa [#allocation3], 1
    %99 = vsyncpa [#allocation4], 1

</llo_original>
